<compile_context>
chip_gen: v6e
topology: v6e:2x2x1
jax: 0.10.0
libtpu: 0.0.40
codegen_flags: <defaults>
</compile_context>

<pallas_src>
import jax
import jax.numpy as jnp
from jax.experimental import pallas as pl
from jax.experimental.pallas import tpu as pltpu


def _elementwise_kernel(x_ref, o_ref):
    # forward: torch.sub(torch.add(torch.mul(x, 2), 3), torch.div(1, 2))
    o_ref[...] = (x_ref[...] * 2.0 + 3.0) - 0.5


def _cdiv(a, b):
    return -(-a // b)


def _round_up(a, b):
    return _cdiv(a, b) * b


def _choose_block_rows(rows, cols, itemsize, sublane, target_bytes):
    """Sublane-aligned block height targeting ~target_bytes, even grid split."""
    if rows <= sublane:
        return rows  # full-height block (equal to the full array dim is allowed)
    max_aligned = (rows // sublane) * sublane
    target_rows = max(sublane, (target_bytes // (cols * itemsize)) // sublane * sublane)
    block_rows = min(target_rows, max_aligned)
    steps = _cdiv(rows, block_rows)
    if steps == 1 and rows > 2 * sublane:
        steps = 2  # give v7x's two TensorCores work
    if steps > 1 and steps % 2 == 1:
        steps += 1  # even split -> balanced across the two TensorCores
    block_rows = min(max_aligned, _round_up(_cdiv(rows, steps), sublane))
    return max(sublane, block_rows)


def _choose_block_1d(n, itemsize, lane_tile, target_bytes):
    """Lane-tile-aligned 1D block size targeting ~target_bytes, even grid split."""
    if n <= lane_tile:
        return n  # single full-array block (equal to the full array dim is allowed)
    max_aligned = (n // lane_tile) * lane_tile
    target_elems = max(lane_tile, (target_bytes // itemsize) // lane_tile * lane_tile)
    block_n = min(target_elems, max_aligned)
    steps = _cdiv(n, block_n)
    if steps == 1 and n > 2 * lane_tile:
        steps = 2
    if steps > 1 and steps % 2 == 1:
        steps += 1
    block_n = min(max_aligned, _round_up(_cdiv(n, steps), lane_tile))
    return max(lane_tile, block_n)


def pt_module_forward(x, *, min_pallas_elems=65536, donate=False):
    """Pallas implementation of PtModule.forward: (x*2 + 3) - (1/2)."""
    orig_shape = x.shape
    n = x.size
    if n == 0:
        return x

    dtype = x.dtype
    itemsize = jnp.dtype(dtype).itemsize
    sublane = max(8, 32 // itemsize)  # f32: 8, bf16: 16, int8: 32

    # Tiny inputs: fixed pallas_call launch/pipeline overhead dominates; let
    # XLA emit a single fused elementwise op instead.
    if n < min_pallas_elems:
        return (x * 2.0 + 3.0) - 0.5

    flat = x.reshape(-1)  # contiguous reshape: bitcast, no HBM copy
    target_bytes = 3 * 1024 * 1024  # ~3 MiB blocks sit near the HBM roofline

    if n % 128 == 0:
        # Lane-dense 2D view: every store is a full-width (unmasked) vst.
        cols = next(c for c in (2048, 1024, 512, 256, 128) if n % c == 0)
        rows = n // cols
        operand = flat.reshape(rows, cols)
        block_rows = _choose_block_rows(rows, cols, itemsize, sublane, target_bytes)
        grid = (_cdiv(rows, block_rows),)
        block_bytes = block_rows * cols * itemsize
        block_spec = pl.BlockSpec((block_rows, cols), lambda i: (i, 0))
        out_struct = jax.ShapeDtypeStruct((rows, cols), dtype)
    else:
        # Ragged size: run over the unpadded flat array; Pallas masks only the
        # single partial last block. No jnp.pad / output-slice HBM copies.
        lane_tile = sublane * 128
        operand = flat
        block_n = _choose_block_1d(n, itemsize, lane_tile, target_bytes)
        grid = (_cdiv(n, block_n),)
        block_bytes = block_n * itemsize
        block_spec = pl.BlockSpec((block_n,), lambda i: (i,))
        out_struct = jax.ShapeDtypeStruct((n,), dtype)

    # 2 arrays (in + out) x 2 pipeline buffers, plus headroom; explicit so the
    # v5e 16 MiB scoped default never constrains the schedule.
    needed = 4 * block_bytes
    vmem_limit = int(min(max(2 * needed, 16 * 1024 * 1024), 64 * 1024 * 1024))

    out = pl.pallas_call(
        _elementwise_kernel,
        out_shape=out_struct,
        grid_spec=pltpu.PrefetchScalarGridSpec(
            num_scalar_prefetch=0,
            grid=grid,
            in_specs=[block_spec],
            out_specs=block_spec,
        ),
        compiler_params=pltpu.CompilerParams(
            dimension_semantics=("parallel",),
            vmem_limit_bytes=vmem_limit,
        ),
        cost_estimate=pl.CostEstimate(
            flops=3 * n, transcendentals=0, bytes_accessed=2 * n * itemsize),
        input_output_aliases=({0: 0} if donate else {}),
    )(operand)

    return out.reshape(orig_shape)


if __name__ == "__main__":
    key = jax.random.PRNGKey(0)
    k1, k2, k3 = jax.random.split(key, 3)

    def reference(x):
        return (x * 2.0 + 3.0) - 0.5

    # Small shape from the module spec (hits the fused-XLA small-size bypass).
    x_small = jax.random.normal(k1, (2, 4, 16, 16), dtype=jnp.float32)
    # 128-divisible size -> lane-dense 2D Pallas path (2 balanced grid steps).
    x_main = jax.random.normal(k2, (2, 4, 128, 256), dtype=jnp.float32)
    # Non-128-divisible size -> ragged 1D Pallas path (masked last block only).
    x_ragged = jax.random.normal(k3, (3, 7, 61, 53), dtype=jnp.float32)

    for x in (x_small, x_main, x_ragged):
        out = pt_module_forward(x)
        jax.block_until_ready(out)
        assert out.shape == x.shape, "shape mismatch vs reference"
        assert jnp.allclose(out, reference(x), atol=1e-6, rtol=1e-6), \
            "mismatch vs reference"

    print("KERNEL_OK")
</pallas_src>

<mosaic_0001>
module attributes {stable_mosaic.version = 11 : i64} {
  func.func @_elementwise_kernel(%arg0: i32, %arg1: memref<64x2048xf32, #tpu.memory_space<vmem>>, %arg2: memref<64x2048xf32, #tpu.memory_space<vmem>>) attributes {dimension_semantics = [#tpu.dimension_semantics<parallel>], iteration_bounds = array<i64: 2>, scalar_prefetch = 0 : i64, scratch_operands = 0 : i64, tpu.core_type = #tpu.core_type<tc>, window_params = [{transform_indices = @transform_0, window_bounds = array<i64: 64, 2048>}, {transform_indices = @transform_1, window_bounds = array<i64: 64, 2048>}]} {
    %c0 = arith.constant 0 : index
    %c0_0 = arith.constant 0 : index
    %0 = vector.load %arg1[%c0, %c0_0] : memref<64x2048xf32, #tpu.memory_space<vmem>>, vector<64x2048xf32>
    %cst = arith.constant 2.000000e+00 : f32
    %1 = vector.broadcast %cst : f32 to vector<64x2048xf32>
    %2 = arith.mulf %0, %1 : vector<64x2048xf32>
    %cst_1 = arith.constant 3.000000e+00 : f32
    %3 = vector.broadcast %cst_1 : f32 to vector<64x2048xf32>
    %4 = arith.addf %2, %3 : vector<64x2048xf32>
    %cst_2 = arith.constant 5.000000e-01 : f32
    %5 = vector.broadcast %cst_2 : f32 to vector<64x2048xf32>
    %6 = arith.subf %4, %5 : vector<64x2048xf32>
    %c0_3 = arith.constant 0 : index
    %c0_4 = arith.constant 0 : index
    %7 = vector.load %arg2[%c0_3, %c0_4] : memref<64x2048xf32, #tpu.memory_space<vmem>>, vector<64x2048xf32>
    tpu.vector_store %arg2[%c0_3, %c0_4], %6 {strides = array<i32>} : memref<64x2048xf32, #tpu.memory_space<vmem>>, vector<64x2048xf32>,
    return
  }
  func.func @transform_0(%arg0: i32) -> (i32, i32) {
    %c0_i32 = arith.constant 0 : i32
    %c0_i32_0 = arith.constant 0 : i32
    return %arg0, %c0_i32 : i32, i32
  }
  func.func @transform_1(%arg0: i32) -> (i32, i32) {
    %c0_i32 = arith.constant 0 : i32
    %c0_i32_0 = arith.constant 0 : i32
    return %arg0, %c0_i32 : i32, i32
  }
}

</mosaic_0001>

<llo_original>
// kernel: tpu_custom_call.1
$region0: #{tpu_custom_call.1}
  #allocation0 [shape = 'u32[]', space=smem, size = 0x4, offset = 0x4, fixed_abs, tag = 'smem constant byte address 0x4 - core index']
  #allocation1 [shape = 'u32[144,128]{1,0:T(1,128)}', space=vmem, size = 0x12000, scoped, tag = 'internal scratch']
  %s0 = inlined_call_operand.hbm [shape: f32[128,2048], index: 0, kind: input, shape index: {}]
  %s1 = inlined_call_operand.hbm [shape: f32[128,2048], index: 1, kind: output, shape index: {}]
  %s2 = sld [smem:[#allocation0]]
  $region41: #{tpu_custom_call.1} parent=0
    _
  %s4 = ssub.s32 1, %s2
  %s5 = scalar_select 0, %s4, %s2
  $region1: #{tpu_custom_call.1} parent=0
    #allocation2 [shape = 'u8[1048576]{0}', space=vmem, size = 0x100000, scoped, tag = 'input window, operand 0']
    #allocation3 [shape = 's32[2]{0}', space=sflag, size = 0x8, scoped, tag = 'scoped memory for tpu_custom_call.1']
    #allocation4 [shape = 's32[2]{0}', space=sflag, size = 0x8, scoped, tag = 'scoped memory for tpu_custom_call.1']
    #allocation5 [shape = 'u8[1048576]{0}', space=vmem, size = 0x100000, scoped, tag = 'output window, operand 0']
    %6 = vsyncpa [#allocation3], 0
    %s7 = scalar_lea.sflag [#allocation3], 1
    %8 = vsyncpa %s7, 0
    %9 = vsyncpa [#allocation4], 0
    %s10 = scalar_lea.sflag [#allocation4], 1
    %11 = vsyncpa %s10, 0
    loop: start=0, step=1, limit=4
    $region2: #{tpu_custom_call.1} parent=1 // loop_pre_header
      _
    $region3: #{tpu_custom_call.1} parent=1 // loop_header
      %s13 = sphi 0, %s17
      %p14 = scmp.ge.s32.totalorder %s13, 4
      %s23 = sphi 0, %s25
      %s26 = sphi 0, %s23
      %s27 = sphi 0, %s26
      %s43 = sphi 0, %s27
      %s49 = sphi 0, %s51
      %s52 = sphi 0, %s49
      %s53 = sphi 0, %s52
      %s69 = sphi 0, %s53
    $region4: #{tpu_custom_call.1} parent=1 // loop_header_branch
      %16 = sbr.rel (%p14) target = $region8
    $region5: #{tpu_custom_call.1} parent=1 // loop_body
      %s18 = ssub.s32 %s13, 1
      %s19 = ssub.s32 %s13, 2
      %s20 = sadd.s32 %s13, 1
      %s21 = ssub.s32 %s13, %s20
      %p22 = scmp.eq.s32.totalorder %s21, 0
      %s24 = sadd.s32 %s23, 1
      %s25 = scalar_select %p22, %s23, %s24
      %p28 = pneg %p22
      %p29 = scmp.eq.s32.totalorder %s13, 1
      %p30 = por %p28, %p29
      %p31 = scmp.ne.s32.totalorder %s23, %s26
      %p32 = scmp.eq.s32.totalorder %s13, 0
      %p33 = por %p31, %p32
      %p34 = scmp.ne.s32.totalorder %s23, %s26
      %p35 = scmp.eq.s32.totalorder %s18, 1
      %p36 = por %p34, %p35
      %p37 = scmp.ne.s32.totalorder %s26, %s27
      %p38 = scmp.eq.s32.totalorder %s18, 0
      %p39 = por %p37, %p38
      %p40 = scmp.ne.s32.totalorder %s26, %s27
      %p41 = scmp.eq.s32.totalorder %s19, 1
      %p42 = por %p40, %p41
      %p44 = scmp.ne.s32.totalorder %s27, %s43
      %p45 = scmp.eq.s32.totalorder %s19, 0
      %p46 = por %p44, %p45
      %s47 = ssub.s32 %s13, %s20
      %p48 = scmp.eq.s32.totalorder %s47, 0
      %s50 = sadd.s32 %s49, 1
      %s51 = scalar_select %p48, %s49, %s50
      %p54 = pneg %p48
      %p55 = scmp.eq.s32.totalorder %s13, 1
      %p56 = por %p54, %p55
      %p57 = scmp.ne.s32.totalorder %s49, %s52
      %p58 = scmp.eq.s32.totalorder %s13, 0
      %p59 = por %p57, %p58
      %p60 = scmp.ne.s32.totalorder %s49, %s52
      %p61 = scmp.eq.s32.totalorder %s18, 1
      %p62 = por %p60, %p61
      %p63 = scmp.ne.s32.totalorder %s52, %s53
      %p64 = scmp.eq.s32.totalorder %s18, 0
      %p65 = por %p63, %p64
      %p66 = scmp.ne.s32.totalorder %s52, %s53
      %p67 = scmp.eq.s32.totalorder %s19, 1
      %p68 = por %p66, %p67
      %p70 = scmp.ne.s32.totalorder %s53, %s69
      %p71 = scmp.eq.s32.totalorder %s19, 0
      %p72 = por %p70, %p71
      %p73 = scmp.le.s32.totalorder 1, %s13
      %p74 = scmp.lt.s32.totalorder %s13, 3
      %p75 = pnand %p73, %p74
      %p76 = pneg %p75
      // Predicated region
      $region9: #{tpu_custom_call.1} parent=5 // pred_check
        _
      $region10: #{tpu_custom_call.1} parent=5 // pred_check_branch
        %78 = sbr.rel (%p75) target = $region12
      $region11: #{tpu_custom_call.1} parent=5 // pred_region
        %s79 = ssub.s32 %s13, 1
      $region12: #{tpu_custom_call.1} parent=5 // pred_fallthru
        _
      %p80 = scmp.lt.s32.totalorder %s13, 2
      // Predicated region
      $region13: #{tpu_custom_call.1} parent=5 // pred_check
        %p81 = pneg %p80
      $region14: #{tpu_custom_call.1} parent=5 // pred_check_branch
        %83 = sbr.rel (%p81) target = $region16
      $region15: #{tpu_custom_call.1} parent=5 // pred_region
        // Predicated region
        $region17: #{tpu_custom_call.1} parent=15 // pred_check
          %p84 = pneg %p33
        $region18: #{tpu_custom_call.1} parent=15 // pred_check_branch
          %86 = sbr.rel (%p84) target = $region20
        $region19: #{tpu_custom_call.1} parent=15 // pred_region
          %s87 = sand.u32 %s23, 1
          %s88 = scalar_lea.sflag [#allocation3], %s87
          %s89 = sand.u32 %s23, 1
          %s90 = smul.addr %s89, 1024
          %s91 = scalar_lea.vmem [#allocation2], %s90
          %s92 = smul.u32 8, %s13
          %s94 = ssub.s32 16384, 16384
          %95 = vsyncadd %s88, %s94
          %s96 = smul.addr %s92, 16
          %s97 = smul.addr %s96, 128
          %s98 = scalar_lea.hbm %s0, %s97
          %s99 = sshll.u32 %s91, 4
          %s100 = int_to_ptr.vmem [resolvable:$true] %s99
          %105 = dma.hbm_to_vmem [thread:$0]  %s98, 16384, %s100, %s88, 2048, 2048, 128
        $region20: #{tpu_custom_call.1} parent=15 // pred_fallthru
          _
      $region16: #{tpu_custom_call.1} parent=5 // pred_fallthru
        _
      %p106 = scmp.le.s32.totalorder 1, %s13
      %p107 = scmp.lt.s32.totalorder %s13, 3
      %p108 = pnand %p106, %p107
      %p109 = pneg %p108
      // Predicated region
      $region21: #{tpu_custom_call.1} parent=5 // pred_check
        _
      $region22: #{tpu_custom_call.1} parent=5 // pred_check_branch
        %111 = sbr.rel (%p108) target = $region24
      $region23: #{tpu_custom_call.1} parent=5 // pred_region
        %s112 = ssub.s32 %s13, 1
        %s113 = sand.u32 %s26, 1
        %s114 = scalar_lea.sflag [#allocation3], %s113
        %s115 = sand.u32 %s26, 1
        %s116 = smul.addr %s115, 1024
        %s117 = scalar_lea.vmem [#allocation2], %s116
        // Predicated region
        $region25: #{tpu_custom_call.1} parent=23 // pred_check
          %p118 = pneg %p39
        $region26: #{tpu_custom_call.1} parent=23 // pred_check_branch
          %120 = sbr.rel (%p118) target = $region28
        $region27: #{tpu_custom_call.1} parent=23 // pred_region
          %121 = dma.done %s114, 16384
        $region28: #{tpu_custom_call.1} parent=23 // pred_fallthru
          _
        %s122 = sand.u32 %s26, 1
        %s123 = scalar_lea.sflag [#allocation3], %s122
        %s124 = sand.u32 %s26, 1
        %s125 = smul.addr %s124, 1024
        %s126 = scalar_lea.vmem [#allocation2], %s125
        %p127 = pneg %p39
        %p128 = pneg %p36
        %p129 = pneg %p65
        %p130 = pneg %p62
        %s131 = sand.u32 %s52, 1
        %s132 = scalar_lea.sflag [#allocation4], %s131
        %s133 = sand.u32 %s52, 1
        %s134 = smul.addr %s133, 1024
        %s135 = scalar_lea.vmem [#allocation5], %s134
        %s136 = smul.u32 8, %s18
        %s137 = smul.u32 8, %s18
        %v138 = vld [vmem:[%s117] sm:$0xff]
        %v139 = vld [vmem:[%s117 + $0x8] sm:$0xff]
        %v140 = vld [vmem:[%s117 + $0x10] sm:$0xff]
        %v141 = vld [vmem:[%s117 + $0x18] sm:$0xff]
        %v142 = vld [vmem:[%s117 + $0x20] sm:$0xff]
        %v143 = vld [vmem:[%s117 + $0x28] sm:$0xff]
        %v144 = vld [vmem:[%s117 + $0x30] sm:$0xff]
        %v145 = vld [vmem:[%s117 + $0x38] sm:$0xff]
        %v146 = vld [vmem:[%s117 + $0x40] sm:$0xff]
        %v147 = vld [vmem:[%s117 + $0x48] sm:$0xff]
        %v148 = vld [vmem:[%s117 + $0x50] sm:$0xff]
        %v149 = vld [vmem:[%s117 + $0x58] sm:$0xff]
        %v150 = vld [vmem:[%s117 + $0x60] sm:$0xff]
        %v151 = vld [vmem:[%s117 + $0x68] sm:$0xff]
        %v152 = vld [vmem:[%s117 + $0x70] sm:$0xff]
        %v153 = vld [vmem:[%s117 + $0x78] sm:$0xff]
        %v154 = vld [vmem:[%s117 + $0x80] sm:$0xff]
        %v155 = vld [vmem:[%s117 + $0x88] sm:$0xff]
        %v156 = vld [vmem:[%s117 + $0x90] sm:$0xff]
        %v157 = vld [vmem:[%s117 + $0x98] sm:$0xff]
        %v158 = vld [vmem:[%s117 + $0xa0] sm:$0xff]
        %v159 = vld [vmem:[%s117 + $0xa8] sm:$0xff]
        %v160 = vld [vmem:[%s117 + $0xb0] sm:$0xff]
        %v161 = vld [vmem:[%s117 + $0xb8] sm:$0xff]
        %v162 = vld [vmem:[%s117 + $0xc0] sm:$0xff]
        %v163 = vld [vmem:[%s117 + $0xc8] sm:$0xff]
        %v164 = vld [vmem:[%s117 + $0xd0] sm:$0xff]
        %v165 = vld [vmem:[%s117 + $0xd8] sm:$0xff]
        %v166 = vld [vmem:[%s117 + $0xe0] sm:$0xff]
        %v167 = vld [vmem:[%s117 + $0xe8] sm:$0xff]
        %v168 = vld [vmem:[%s117 + $0xf0] sm:$0xff]
        %v169 = vld [vmem:[%s117 + $0xf8] sm:$0xff]
        %v170 = vld [vmem:[%s117 + $0x100] sm:$0xff]
        %v171 = vld [vmem:[%s117 + $0x108] sm:$0xff]
        %v172 = vld [vmem:[%s117 + $0x110] sm:$0xff]
        %v173 = vld [vmem:[%s117 + $0x118] sm:$0xff]
        %v174 = vld [vmem:[%s117 + $0x120] sm:$0xff]
        %v175 = vld [vmem:[%s117 + $0x128] sm:$0xff]
        %v176 = vld [vmem:[%s117 + $0x130] sm:$0xff]
        %v177 = vld [vmem:[%s117 + $0x138] sm:$0xff]
        %v178 = vld [vmem:[%s117 + $0x140] sm:$0xff]
        %v179 = vld [vmem:[%s117 + $0x148] sm:$0xff]
        %v180 = vld [vmem:[%s117 + $0x150] sm:$0xff]
        %v181 = vld [vmem:[%s117 + $0x158] sm:$0xff]
        %v182 = vld [vmem:[%s117 + $0x160] sm:$0xff]
        %v183 = vld [vmem:[%s117 + $0x168] sm:$0xff]
        %v184 = vld [vmem:[%s117 + $0x170] sm:$0xff]
        %v185 = vld [vmem:[%s117 + $0x178] sm:$0xff]
        %v186 = vld [vmem:[%s117 + $0x180] sm:$0xff]
        %v187 = vld [vmem:[%s117 + $0x188] sm:$0xff]
        %v188 = vld [vmem:[%s117 + $0x190] sm:$0xff]
        %v189 = vld [vmem:[%s117 + $0x198] sm:$0xff]
        %v190 = vld [vmem:[%s117 + $0x1a0] sm:$0xff]
        %v191 = vld [vmem:[%s117 + $0x1a8] sm:$0xff]
        %v192 = vld [vmem:[%s117 + $0x1b0] sm:$0xff]
        %v193 = vld [vmem:[%s117 + $0x1b8] sm:$0xff]
        %v194 = vld [vmem:[%s117 + $0x1c0] sm:$0xff]
        %v195 = vld [vmem:[%s117 + $0x1c8] sm:$0xff]
        %v196 = vld [vmem:[%s117 + $0x1d0] sm:$0xff]
        %v197 = vld [vmem:[%s117 + $0x1d8] sm:$0xff]
        %v198 = vld [vmem:[%s117 + $0x1e0] sm:$0xff]
        %v199 = vld [vmem:[%s117 + $0x1e8] sm:$0xff]
        %v200 = vld [vmem:[%s117 + $0x1f0] sm:$0xff]
        %v201 = vld [vmem:[%s117 + $0x1f8] sm:$0xff]
        %v202 = vld [vmem:[%s117 + $0x200] sm:$0xff]
        %v203 = vld [vmem:[%s117 + $0x208] sm:$0xff]
        %v204 = vld [vmem:[%s117 + $0x210] sm:$0xff]
        %v205 = vld [vmem:[%s117 + $0x218] sm:$0xff]
        %v206 = vld [vmem:[%s117 + $0x220] sm:$0xff]
        %v207 = vld [vmem:[%s117 + $0x228] sm:$0xff]
        %v208 = vld [vmem:[%s117 + $0x230] sm:$0xff]
        %v209 = vld [vmem:[%s117 + $0x238] sm:$0xff]
        %v210 = vld [vmem:[%s117 + $0x240] sm:$0xff]
        %v211 = vld [vmem:[%s117 + $0x248] sm:$0xff]
        %v212 = vld [vmem:[%s117 + $0x250] sm:$0xff]
        %v213 = vld [vmem:[%s117 + $0x258] sm:$0xff]
        %v214 = vld [vmem:[%s117 + $0x260] sm:$0xff]
        %v215 = vld [vmem:[%s117 + $0x268] sm:$0xff]
        %v216 = vld [vmem:[%s117 + $0x270] sm:$0xff]
        %v217 = vld [vmem:[%s117 + $0x278] sm:$0xff]
        %v218 = vld [vmem:[%s117 + $0x280] sm:$0xff]
        %v219 = vld [vmem:[%s117 + $0x288] sm:$0xff]
        %v220 = vld [vmem:[%s117 + $0x290] sm:$0xff]
        %v221 = vld [vmem:[%s117 + $0x298] sm:$0xff]
        %v222 = vld [vmem:[%s117 + $0x2a0] sm:$0xff]
        %v223 = vld [vmem:[%s117 + $0x2a8] sm:$0xff]
        %v224 = vld [vmem:[%s117 + $0x2b0] sm:$0xff]
        %v225 = vld [vmem:[%s117 + $0x2b8] sm:$0xff]
        %v226 = vld [vmem:[%s117 + $0x2c0] sm:$0xff]
        %v227 = vld [vmem:[%s117 + $0x2c8] sm:$0xff]
        %v228 = vld [vmem:[%s117 + $0x2d0] sm:$0xff]
        %v229 = vld [vmem:[%s117 + $0x2d8] sm:$0xff]
        %v230 = vld [vmem:[%s117 + $0x2e0] sm:$0xff]
        %v231 = vld [vmem:[%s117 + $0x2e8] sm:$0xff]
        %v232 = vld [vmem:[%s117 + $0x2f0] sm:$0xff]
        %v233 = vld [vmem:[%s117 + $0x2f8] sm:$0xff]
        %v234 = vld [vmem:[%s117 + $0x300] sm:$0xff]
        %v235 = vld [vmem:[%s117 + $0x308] sm:$0xff]
        %v236 = vld [vmem:[%s117 + $0x310] sm:$0xff]
        %v237 = vld [vmem:[%s117 + $0x318] sm:$0xff]
        %v238 = vld [vmem:[%s117 + $0x320] sm:$0xff]
        %v239 = vld [vmem:[%s117 + $0x328] sm:$0xff]
        %v240 = vld [vmem:[%s117 + $0x330] sm:$0xff]
        %v241 = vld [vmem:[%s117 + $0x338] sm:$0xff]
        %v242 = vld [vmem:[%s117 + $0x340] sm:$0xff]
        %v243 = vld [vmem:[%s117 + $0x348] sm:$0xff]
        %v244 = vld [vmem:[%s117 + $0x350] sm:$0xff]
        %v245 = vld [vmem:[%s117 + $0x358] sm:$0xff]
        %v246 = vld [vmem:[%s117 + $0x360] sm:$0xff]
        %v247 = vld [vmem:[%s117 + $0x368] sm:$0xff]
        %v248 = vld [vmem:[%s117 + $0x370] sm:$0xff]
        %v249 = vld [vmem:[%s117 + $0x378] sm:$0xff]
        %v250 = vld [vmem:[%s117 + $0x380] sm:$0xff]
        %v251 = vld [vmem:[%s117 + $0x388] sm:$0xff]
        %v252 = vld [vmem:[%s117 + $0x390] sm:$0xff]
        %v253 = vld [vmem:[%s117 + $0x398] sm:$0xff]
        %v254 = vld [vmem:[%s117 + $0x3a0] sm:$0xff]
        %v255 = vld [vmem:[%s117 + $0x3a8] sm:$0xff]
        %v256 = vld [vmem:[%s117 + $0x3b0] sm:$0xff]
        %v257 = vld [vmem:[%s117 + $0x3b8] sm:$0xff]
        %v258 = vld [vmem:[%s117 + $0x3c0] sm:$0xff]
        %v259 = vld [vmem:[%s117 + $0x3c8] sm:$0xff]
        %v260 = vld [vmem:[%s117 + $0x3d0] sm:$0xff]
        %v261 = vld [vmem:[%s117 + $0x3d8] sm:$0xff]
        %v262 = vld [vmem:[%s117 + $0x3e0] sm:$0xff]
        %v263 = vld [vmem:[%s117 + $0x3e8] sm:$0xff]
        %v264 = vld [vmem:[%s117 + $0x3f0] sm:$0xff]
        %v265 = vld [vmem:[%s117 + $0x3f8] sm:$0xff]
        %v266 = vmul.f32 %v138, 2.0
        %v267 = vmul.f32 %v139, 2.0
        %v268 = vmul.f32 %v140, 2.0
        %v269 = vmul.f32 %v141, 2.0
        %v270 = vmul.f32 %v142, 2.0
        %v271 = vmul.f32 %v143, 2.0
        %v272 = vmul.f32 %v144, 2.0
        %v273 = vmul.f32 %v145, 2.0
        %v274 = vmul.f32 %v146, 2.0
        %v275 = vmul.f32 %v147, 2.0
        %v276 = vmul.f32 %v148, 2.0
        %v277 = vmul.f32 %v149, 2.0
        %v278 = vmul.f32 %v150, 2.0
        %v279 = vmul.f32 %v151, 2.0
        %v280 = vmul.f32 %v152, 2.0
        %v281 = vmul.f32 %v153, 2.0
        %v282 = vmul.f32 %v154, 2.0
        %v283 = vmul.f32 %v155, 2.0
        %v284 = vmul.f32 %v156, 2.0
        %v285 = vmul.f32 %v157, 2.0
        %v286 = vmul.f32 %v158, 2.0
        %v287 = vmul.f32 %v159, 2.0
        %v288 = vmul.f32 %v160, 2.0
        %v289 = vmul.f32 %v161, 2.0
        %v290 = vmul.f32 %v162, 2.0
        %v291 = vmul.f32 %v163, 2.0
        %v292 = vmul.f32 %v164, 2.0
        %v293 = vmul.f32 %v165, 2.0
        %v294 = vmul.f32 %v166, 2.0
        %v295 = vmul.f32 %v167, 2.0
        %v296 = vmul.f32 %v168, 2.0
        %v297 = vmul.f32 %v169, 2.0
        %v298 = vmul.f32 %v170, 2.0
        %v299 = vmul.f32 %v171, 2.0
        %v300 = vmul.f32 %v172, 2.0
        %v301 = vmul.f32 %v173, 2.0
        %v302 = vmul.f32 %v174, 2.0
        %v303 = vmul.f32 %v175, 2.0
        %v304 = vmul.f32 %v176, 2.0
        %v305 = vmul.f32 %v177, 2.0
        %v306 = vmul.f32 %v178, 2.0
        %v307 = vmul.f32 %v179, 2.0
        %v308 = vmul.f32 %v180, 2.0
        %v309 = vmul.f32 %v181, 2.0
        %v310 = vmul.f32 %v182, 2.0
        %v311 = vmul.f32 %v183, 2.0
        %v312 = vmul.f32 %v184, 2.0
        %v313 = vmul.f32 %v185, 2.0
        %v314 = vmul.f32 %v186, 2.0
        %v315 = vmul.f32 %v187, 2.0
        %v316 = vmul.f32 %v188, 2.0
        %v317 = vmul.f32 %v189, 2.0
        %v318 = vmul.f32 %v190, 2.0
        %v319 = vmul.f32 %v191, 2.0
        %v320 = vmul.f32 %v192, 2.0
        %v321 = vmul.f32 %v193, 2.0
        %v322 = vmul.f32 %v194, 2.0
        %v323 = vmul.f32 %v195, 2.0
        %v324 = vmul.f32 %v196, 2.0
        %v325 = vmul.f32 %v197, 2.0
        %v326 = vmul.f32 %v198, 2.0
        %v327 = vmul.f32 %v199, 2.0
        %v328 = vmul.f32 %v200, 2.0
        %v329 = vmul.f32 %v201, 2.0
        %v330 = vmul.f32 %v202, 2.0
        %v331 = vmul.f32 %v203, 2.0
        %v332 = vmul.f32 %v204, 2.0
        %v333 = vmul.f32 %v205, 2.0
        %v334 = vmul.f32 %v206, 2.0
        %v335 = vmul.f32 %v207, 2.0
        %v336 = vmul.f32 %v208, 2.0
        %v337 = vmul.f32 %v209, 2.0
        %v338 = vmul.f32 %v210, 2.0
        %v339 = vmul.f32 %v211, 2.0
        %v340 = vmul.f32 %v212, 2.0
        %v341 = vmul.f32 %v213, 2.0
        %v342 = vmul.f32 %v214, 2.0
        %v343 = vmul.f32 %v215, 2.0
        %v344 = vmul.f32 %v216, 2.0
        %v345 = vmul.f32 %v217, 2.0
        %v346 = vmul.f32 %v218, 2.0
        %v347 = vmul.f32 %v219, 2.0
        %v348 = vmul.f32 %v220, 2.0
        %v349 = vmul.f32 %v221, 2.0
        %v350 = vmul.f32 %v222, 2.0
        %v351 = vmul.f32 %v223, 2.0
        %v352 = vmul.f32 %v224, 2.0
        %v353 = vmul.f32 %v225, 2.0
        %v354 = vmul.f32 %v226, 2.0
        %v355 = vmul.f32 %v227, 2.0
        %v356 = vmul.f32 %v228, 2.0
        %v357 = vmul.f32 %v229, 2.0
        %v358 = vmul.f32 %v230, 2.0
        %v359 = vmul.f32 %v231, 2.0
        %v360 = vmul.f32 %v232, 2.0
        %v361 = vmul.f32 %v233, 2.0
        %v362 = vmul.f32 %v234, 2.0
        %v363 = vmul.f32 %v235, 2.0
        %v364 = vmul.f32 %v236, 2.0
        %v365 = vmul.f32 %v237, 2.0
        %v366 = vmul.f32 %v238, 2.0
        %v367 = vmul.f32 %v239, 2.0
        %v368 = vmul.f32 %v240, 2.0
        %v369 = vmul.f32 %v241, 2.0
        %v370 = vmul.f32 %v242, 2.0
        %v371 = vmul.f32 %v243, 2.0
        %v372 = vmul.f32 %v244, 2.0
        %v373 = vmul.f32 %v245, 2.0
        %v374 = vmul.f32 %v246, 2.0
        %v375 = vmul.f32 %v247, 2.0
        %v376 = vmul.f32 %v248, 2.0
        %v377 = vmul.f32 %v249, 2.0
        %v378 = vmul.f32 %v250, 2.0
        %v379 = vmul.f32 %v251, 2.0
        %v380 = vmul.f32 %v252, 2.0
        %v381 = vmul.f32 %v253, 2.0
        %v382 = vmul.f32 %v254, 2.0
        %v383 = vmul.f32 %v255, 2.0
        %v384 = vmul.f32 %v256, 2.0
        %v385 = vmul.f32 %v257, 2.0
        %v386 = vmul.f32 %v258, 2.0
        %v387 = vmul.f32 %v259, 2.0
        %v388 = vmul.f32 %v260, 2.0
        %v389 = vmul.f32 %v261, 2.0
        %v390 = vmul.f32 %v262, 2.0
        %v391 = vmul.f32 %v263, 2.0
        %v392 = vmul.f32 %v264, 2.0
        %v393 = vmul.f32 %v265, 2.0
        %v394 = vadd.f32 %v266, 3.0
        %v395 = vadd.f32 %v267, 3.0
        %v396 = vadd.f32 %v268, 3.0
        %v397 = vadd.f32 %v269, 3.0
        %v398 = vadd.f32 %v270, 3.0
        %v399 = vadd.f32 %v271, 3.0
        %v400 = vadd.f32 %v272, 3.0
        %v401 = vadd.f32 %v273, 3.0
        %v402 = vadd.f32 %v274, 3.0
        %v403 = vadd.f32 %v275, 3.0
        %v404 = vadd.f32 %v276, 3.0
        %v405 = vadd.f32 %v277, 3.0
        %v406 = vadd.f32 %v278, 3.0
        %v407 = vadd.f32 %v279, 3.0
        %v408 = vadd.f32 %v280, 3.0
        %v409 = vadd.f32 %v281, 3.0
        %v410 = vadd.f32 %v282, 3.0
        %v411 = vadd.f32 %v283, 3.0
        %v412 = vadd.f32 %v284, 3.0
        %v413 = vadd.f32 %v285, 3.0
        %v414 = vadd.f32 %v286, 3.0
        %v415 = vadd.f32 %v287, 3.0
        %v416 = vadd.f32 %v288, 3.0
        %v417 = vadd.f32 %v289, 3.0
        %v418 = vadd.f32 %v290, 3.0
        %v419 = vadd.f32 %v291, 3.0
        %v420 = vadd.f32 %v292, 3.0
        %v421 = vadd.f32 %v293, 3.0
        %v422 = vadd.f32 %v294, 3.0
        %v423 = vadd.f32 %v295, 3.0
        %v424 = vadd.f32 %v296, 3.0
        %v425 = vadd.f32 %v297, 3.0
        %v426 = vadd.f32 %v298, 3.0
        %v427 = vadd.f32 %v299, 3.0
        %v428 = vadd.f32 %v300, 3.0
        %v429 = vadd.f32 %v301, 3.0
        %v430 = vadd.f32 %v302, 3.0
        %v431 = vadd.f32 %v303, 3.0
        %v432 = vadd.f32 %v304, 3.0
        %v433 = vadd.f32 %v305, 3.0
        %v434 = vadd.f32 %v306, 3.0
        %v435 = vadd.f32 %v307, 3.0
        %v436 = vadd.f32 %v308, 3.0
        %v437 = vadd.f32 %v309, 3.0
        %v438 = vadd.f32 %v310, 3.0
        %v439 = vadd.f32 %v311, 3.0
        %v440 = vadd.f32 %v312, 3.0
        %v441 = vadd.f32 %v313, 3.0
        %v442 = vadd.f32 %v314, 3.0
        %v443 = vadd.f32 %v315, 3.0
        %v444 = vadd.f32 %v316, 3.0
        %v445 = vadd.f32 %v317, 3.0
        %v446 = vadd.f32 %v318, 3.0
        %v447 = vadd.f32 %v319, 3.0
        %v448 = vadd.f32 %v320, 3.0
        %v449 = vadd.f32 %v321, 3.0
        %v450 = vadd.f32 %v322, 3.0
        %v451 = vadd.f32 %v323, 3.0
        %v452 = vadd.f32 %v324, 3.0
        %v453 = vadd.f32 %v325, 3.0
        %v454 = vadd.f32 %v326, 3.0
        %v455 = vadd.f32 %v327, 3.0
        %v456 = vadd.f32 %v328, 3.0
        %v457 = vadd.f32 %v329, 3.0
        %v458 = vadd.f32 %v330, 3.0
        %v459 = vadd.f32 %v331, 3.0
        %v460 = vadd.f32 %v332, 3.0
        %v461 = vadd.f32 %v333, 3.0
        %v462 = vadd.f32 %v334, 3.0
        %v463 = vadd.f32 %v335, 3.0
        %v464 = vadd.f32 %v336, 3.0
        %v465 = vadd.f32 %v337, 3.0
        %v466 = vadd.f32 %v338, 3.0
        %v467 = vadd.f32 %v339, 3.0
        %v468 = vadd.f32 %v340, 3.0
        %v469 = vadd.f32 %v341, 3.0
        %v470 = vadd.f32 %v342, 3.0
        %v471 = vadd.f32 %v343, 3.0
        %v472 = vadd.f32 %v344, 3.0
        %v473 = vadd.f32 %v345, 3.0
        %v474 = vadd.f32 %v346, 3.0
        %v475 = vadd.f32 %v347, 3.0
        %v476 = vadd.f32 %v348, 3.0
        %v477 = vadd.f32 %v349, 3.0
        %v478 = vadd.f32 %v350, 3.0
        %v479 = vadd.f32 %v351, 3.0
        %v480 = vadd.f32 %v352, 3.0
        %v481 = vadd.f32 %v353, 3.0
        %v482 = vadd.f32 %v354, 3.0
        %v483 = vadd.f32 %v355, 3.0
        %v484 = vadd.f32 %v356, 3.0
        %v485 = vadd.f32 %v357, 3.0
        %v486 = vadd.f32 %v358, 3.0
        %v487 = vadd.f32 %v359, 3.0
        %v488 = vadd.f32 %v360, 3.0
        %v489 = vadd.f32 %v361, 3.0
        %v490 = vadd.f32 %v362, 3.0
        %v491 = vadd.f32 %v363, 3.0
        %v492 = vadd.f32 %v364, 3.0
        %v493 = vadd.f32 %v365, 3.0
        %v494 = vadd.f32 %v366, 3.0
        %v495 = vadd.f32 %v367, 3.0
        %v496 = vadd.f32 %v368, 3.0
        %v497 = vadd.f32 %v369, 3.0
        %v498 = vadd.f32 %v370, 3.0
        %v499 = vadd.f32 %v371, 3.0
        %v500 = vadd.f32 %v372, 3.0
        %v501 = vadd.f32 %v373, 3.0
        %v502 = vadd.f32 %v374, 3.0
        %v503 = vadd.f32 %v375, 3.0
        %v504 = vadd.f32 %v376, 3.0
        %v505 = vadd.f32 %v377, 3.0
        %v506 = vadd.f32 %v378, 3.0
        %v507 = vadd.f32 %v379, 3.0
        %v508 = vadd.f32 %v380, 3.0
        %v509 = vadd.f32 %v381, 3.0
        %v510 = vadd.f32 %v382, 3.0
        %v511 = vadd.f32 %v383, 3.0
        %v512 = vadd.f32 %v384, 3.0
        %v513 = vadd.f32 %v385, 3.0
        %v514 = vadd.f32 %v386, 3.0
        %v515 = vadd.f32 %v387, 3.0
        %v516 = vadd.f32 %v388, 3.0
        %v517 = vadd.f32 %v389, 3.0
        %v518 = vadd.f32 %v390, 3.0
        %v519 = vadd.f32 %v391, 3.0
        %v520 = vadd.f32 %v392, 3.0
        %v521 = vadd.f32 %v393, 3.0
        %v522 = vsub.f32 %v394, 0.5
        %v523 = vsub.f32 %v395, 0.5
        %v524 = vsub.f32 %v396, 0.5
        %v525 = vsub.f32 %v397, 0.5
        %v526 = vsub.f32 %v398, 0.5
        %v527 = vsub.f32 %v399, 0.5
        %v528 = vsub.f32 %v400, 0.5
        %v529 = vsub.f32 %v401, 0.5
        %v530 = vsub.f32 %v402, 0.5
        %v531 = vsub.f32 %v403, 0.5
        %v532 = vsub.f32 %v404, 0.5
        %v533 = vsub.f32 %v405, 0.5
        %v534 = vsub.f32 %v406, 0.5
        %v535 = vsub.f32 %v407, 0.5
        %v536 = vsub.f32 %v408, 0.5
        %v537 = vsub.f32 %v409, 0.5
        %v538 = vsub.f32 %v410, 0.5
        %v539 = vsub.f32 %v411, 0.5
        %v540 = vsub.f32 %v412, 0.5
        %v541 = vsub.f32 %v413, 0.5
        %v542 = vsub.f32 %v414, 0.5
        %v543 = vsub.f32 %v415, 0.5
        %v544 = vsub.f32 %v416, 0.5
        %v545 = vsub.f32 %v417, 0.5
        %v546 = vsub.f32 %v418, 0.5
        %v547 = vsub.f32 %v419, 0.5
        %v548 = vsub.f32 %v420, 0.5
        %v549 = vsub.f32 %v421, 0.5
        %v550 = vsub.f32 %v422, 0.5
        %v551 = vsub.f32 %v423, 0.5
        %v552 = vsub.f32 %v424, 0.5
        %v553 = vsub.f32 %v425, 0.5
        %v554 = vsub.f32 %v426, 0.5
        %v555 = vsub.f32 %v427, 0.5
        %v556 = vsub.f32 %v428, 0.5
        %v557 = vsub.f32 %v429, 0.5
        %v558 = vsub.f32 %v430, 0.5
        %v559 = vsub.f32 %v431, 0.5
        %v560 = vsub.f32 %v432, 0.5
        %v561 = vsub.f32 %v433, 0.5
        %v562 = vsub.f32 %v434, 0.5
        %v563 = vsub.f32 %v435, 0.5
        %v564 = vsub.f32 %v436, 0.5
        %v565 = vsub.f32 %v437, 0.5
        %v566 = vsub.f32 %v438, 0.5
        %v567 = vsub.f32 %v439, 0.5
        %v568 = vsub.f32 %v440, 0.5
        %v569 = vsub.f32 %v441, 0.5
        %v570 = vsub.f32 %v442, 0.5
        %v571 = vsub.f32 %v443, 0.5
        %v572 = vsub.f32 %v444, 0.5
        %v573 = vsub.f32 %v445, 0.5
        %v574 = vsub.f32 %v446, 0.5
        %v575 = vsub.f32 %v447, 0.5
        %v576 = vsub.f32 %v448, 0.5
        %v577 = vsub.f32 %v449, 0.5
        %v578 = vsub.f32 %v450, 0.5
        %v579 = vsub.f32 %v451, 0.5
        %v580 = vsub.f32 %v452, 0.5
        %v581 = vsub.f32 %v453, 0.5
        %v582 = vsub.f32 %v454, 0.5
        %v583 = vsub.f32 %v455, 0.5
        %v584 = vsub.f32 %v456, 0.5
        %v585 = vsub.f32 %v457, 0.5
        %v586 = vsub.f32 %v458, 0.5
        %v587 = vsub.f32 %v459, 0.5
        %v588 = vsub.f32 %v460, 0.5
        %v589 = vsub.f32 %v461, 0.5
        %v590 = vsub.f32 %v462, 0.5
        %v591 = vsub.f32 %v463, 0.5
        %v592 = vsub.f32 %v464, 0.5
        %v593 = vsub.f32 %v465, 0.5
        %v594 = vsub.f32 %v466, 0.5
        %v595 = vsub.f32 %v467, 0.5
        %v596 = vsub.f32 %v468, 0.5
        %v597 = vsub.f32 %v469, 0.5
        %v598 = vsub.f32 %v470, 0.5
        %v599 = vsub.f32 %v471, 0.5
        %v600 = vsub.f32 %v472, 0.5
        %v601 = vsub.f32 %v473, 0.5
        %v602 = vsub.f32 %v474, 0.5
        %v603 = vsub.f32 %v475, 0.5
        %v604 = vsub.f32 %v476, 0.5
        %v605 = vsub.f32 %v477, 0.5
        %v606 = vsub.f32 %v478, 0.5
        %v607 = vsub.f32 %v479, 0.5
        %v608 = vsub.f32 %v480, 0.5
        %v609 = vsub.f32 %v481, 0.5
        %v610 = vsub.f32 %v482, 0.5
        %v611 = vsub.f32 %v483, 0.5
        %v612 = vsub.f32 %v484, 0.5
        %v613 = vsub.f32 %v485, 0.5
        %v614 = vsub.f32 %v486, 0.5
        %v615 = vsub.f32 %v487, 0.5
        %v616 = vsub.f32 %v488, 0.5
        %v617 = vsub.f32 %v489, 0.5
        %v618 = vsub.f32 %v490, 0.5
        %v619 = vsub.f32 %v491, 0.5
        %v620 = vsub.f32 %v492, 0.5
        %v621 = vsub.f32 %v493, 0.5
        %v622 = vsub.f32 %v494, 0.5
        %v623 = vsub.f32 %v495, 0.5
        %v624 = vsub.f32 %v496, 0.5
        %v625 = vsub.f32 %v497, 0.5
        %v626 = vsub.f32 %v498, 0.5
        %v627 = vsub.f32 %v499, 0.5
        %v628 = vsub.f32 %v500, 0.5
        %v629 = vsub.f32 %v501, 0.5
        %v630 = vsub.f32 %v502, 0.5
        %v631 = vsub.f32 %v503, 0.5
        %v632 = vsub.f32 %v504, 0.5
        %v633 = vsub.f32 %v505, 0.5
        %v634 = vsub.f32 %v506, 0.5
        %v635 = vsub.f32 %v507, 0.5
        %v636 = vsub.f32 %v508, 0.5
        %v637 = vsub.f32 %v509, 0.5
        %v638 = vsub.f32 %v510, 0.5
        %v639 = vsub.f32 %v511, 0.5
        %v640 = vsub.f32 %v512, 0.5
        %v641 = vsub.f32 %v513, 0.5
        %v642 = vsub.f32 %v514, 0.5
        %v643 = vsub.f32 %v515, 0.5
        %v644 = vsub.f32 %v516, 0.5
        %v645 = vsub.f32 %v517, 0.5
        %v646 = vsub.f32 %v518, 0.5
        %v647 = vsub.f32 %v519, 0.5
        %v648 = vsub.f32 %v520, 0.5
        %v649 = vsub.f32 %v521, 0.5
        %650 = vst [vmem:[%s135] sm:$0xff] %v522
        %651 = vst [vmem:[%s135 + $0x8] sm:$0xff] %v523
        %652 = vst [vmem:[%s135 + $0x10] sm:$0xff] %v524
        %653 = vst [vmem:[%s135 + $0x18] sm:$0xff] %v525
        %654 = vst [vmem:[%s135 + $0x20] sm:$0xff] %v526
        %655 = vst [vmem:[%s135 + $0x28] sm:$0xff] %v527
        %656 = vst [vmem:[%s135 + $0x30] sm:$0xff] %v528
        %657 = vst [vmem:[%s135 + $0x38] sm:$0xff] %v529
        %658 = vst [vmem:[%s135 + $0x40] sm:$0xff] %v530
        %659 = vst [vmem:[%s135 + $0x48] sm:$0xff] %v531
        %660 = vst [vmem:[%s135 + $0x50] sm:$0xff] %v532
        %661 = vst [vmem:[%s135 + $0x58] sm:$0xff] %v533
        %662 = vst [vmem:[%s135 + $0x60] sm:$0xff] %v534
        %663 = vst [vmem:[%s135 + $0x68] sm:$0xff] %v535
        %664 = vst [vmem:[%s135 + $0x70] sm:$0xff] %v536
        %665 = vst [vmem:[%s135 + $0x78] sm:$0xff] %v537
        %666 = vst [vmem:[%s135 + $0x80] sm:$0xff] %v538
        %667 = vst [vmem:[%s135 + $0x88] sm:$0xff] %v539
        %668 = vst [vmem:[%s135 + $0x90] sm:$0xff] %v540
        %669 = vst [vmem:[%s135 + $0x98] sm:$0xff] %v541
        %670 = vst [vmem:[%s135 + $0xa0] sm:$0xff] %v542
        %671 = vst [vmem:[%s135 + $0xa8] sm:$0xff] %v543
        %672 = vst [vmem:[%s135 + $0xb0] sm:$0xff] %v544
        %673 = vst [vmem:[%s135 + $0xb8] sm:$0xff] %v545
        %674 = vst [vmem:[%s135 + $0xc0] sm:$0xff] %v546
        %675 = vst [vmem:[%s135 + $0xc8] sm:$0xff] %v547
        %676 = vst [vmem:[%s135 + $0xd0] sm:$0xff] %v548
        %677 = vst [vmem:[%s135 + $0xd8] sm:$0xff] %v549
        %678 = vst [vmem:[%s135 + $0xe0] sm:$0xff] %v550
        %679 = vst [vmem:[%s135 + $0xe8] sm:$0xff] %v551
        %680 = vst [vmem:[%s135 + $0xf0] sm:$0xff] %v552
        %681 = vst [vmem:[%s135 + $0xf8] sm:$0xff] %v553
        %682 = vst [vmem:[%s135 + $0x100] sm:$0xff] %v554
        %683 = vst [vmem:[%s135 + $0x108] sm:$0xff] %v555
        %684 = vst [vmem:[%s135 + $0x110] sm:$0xff] %v556
        %685 = vst [vmem:[%s135 + $0x118] sm:$0xff] %v557
        %686 = vst [vmem:[%s135 + $0x120] sm:$0xff] %v558
        %687 = vst [vmem:[%s135 + $0x128] sm:$0xff] %v559
        %688 = vst [vmem:[%s135 + $0x130] sm:$0xff] %v560
        %689 = vst [vmem:[%s135 + $0x138] sm:$0xff] %v561
        %690 = vst [vmem:[%s135 + $0x140] sm:$0xff] %v562
        %691 = vst [vmem:[%s135 + $0x148] sm:$0xff] %v563
        %692 = vst [vmem:[%s135 + $0x150] sm:$0xff] %v564
        %693 = vst [vmem:[%s135 + $0x158] sm:$0xff] %v565
        %694 = vst [vmem:[%s135 + $0x160] sm:$0xff] %v566
        %695 = vst [vmem:[%s135 + $0x168] sm:$0xff] %v567
        %696 = vst [vmem:[%s135 + $0x170] sm:$0xff] %v568
        %697 = vst [vmem:[%s135 + $0x178] sm:$0xff] %v569
        %698 = vst [vmem:[%s135 + $0x180] sm:$0xff] %v570
        %699 = vst [vmem:[%s135 + $0x188] sm:$0xff] %v571
        %700 = vst [vmem:[%s135 + $0x190] sm:$0xff] %v572
        %701 = vst [vmem:[%s135 + $0x198] sm:$0xff] %v573
        %702 = vst [vmem:[%s135 + $0x1a0] sm:$0xff] %v574
        %703 = vst [vmem:[%s135 + $0x1a8] sm:$0xff] %v575
        %704 = vst [vmem:[%s135 + $0x1b0] sm:$0xff] %v576
        %705 = vst [vmem:[%s135 + $0x1b8] sm:$0xff] %v577
        %706 = vst [vmem:[%s135 + $0x1c0] sm:$0xff] %v578
        %707 = vst [vmem:[%s135 + $0x1c8] sm:$0xff] %v579
        %708 = vst [vmem:[%s135 + $0x1d0] sm:$0xff] %v580
        %709 = vst [vmem:[%s135 + $0x1d8] sm:$0xff] %v581
        %710 = vst [vmem:[%s135 + $0x1e0] sm:$0xff] %v582
        %711 = vst [vmem:[%s135 + $0x1e8] sm:$0xff] %v583
        %712 = vst [vmem:[%s135 + $0x1f0] sm:$0xff] %v584
        %713 = vst [vmem:[%s135 + $0x1f8] sm:$0xff] %v585
        %714 = vst [vmem:[%s135 + $0x200] sm:$0xff] %v586
        %715 = vst [vmem:[%s135 + $0x208] sm:$0xff] %v587
        %716 = vst [vmem:[%s135 + $0x210] sm:$0xff] %v588
        %717 = vst [vmem:[%s135 + $0x218] sm:$0xff] %v589
        %718 = vst [vmem:[%s135 + $0x220] sm:$0xff] %v590
        %719 = vst [vmem:[%s135 + $0x228] sm:$0xff] %v591
        %720 = vst [vmem:[%s135 + $0x230] sm:$0xff] %v592
        %721 = vst [vmem:[%s135 + $0x238] sm:$0xff] %v593
        %722 = vst [vmem:[%s135 + $0x240] sm:$0xff] %v594
        %723 = vst [vmem:[%s135 + $0x248] sm:$0xff] %v595
        %724 = vst [vmem:[%s135 + $0x250] sm:$0xff] %v596
        %725 = vst [vmem:[%s135 + $0x258] sm:$0xff] %v597
        %726 = vst [vmem:[%s135 + $0x260] sm:$0xff] %v598
        %727 = vst [vmem:[%s135 + $0x268] sm:$0xff] %v599
        %728 = vst [vmem:[%s135 + $0x270] sm:$0xff] %v600
        %729 = vst [vmem:[%s135 + $0x278] sm:$0xff] %v601
        %730 = vst [vmem:[%s135 + $0x280] sm:$0xff] %v602
        %731 = vst [vmem:[%s135 + $0x288] sm:$0xff] %v603
        %732 = vst [vmem:[%s135 + $0x290] sm:$0xff] %v604
        %733 = vst [vmem:[%s135 + $0x298] sm:$0xff] %v605
        %734 = vst [vmem:[%s135 + $0x2a0] sm:$0xff] %v606
        %735 = vst [vmem:[%s135 + $0x2a8] sm:$0xff] %v607
        %736 = vst [vmem:[%s135 + $0x2b0] sm:$0xff] %v608
        %737 = vst [vmem:[%s135 + $0x2b8] sm:$0xff] %v609
        %738 = vst [vmem:[%s135 + $0x2c0] sm:$0xff] %v610
        %739 = vst [vmem:[%s135 + $0x2c8] sm:$0xff] %v611
        %740 = vst [vmem:[%s135 + $0x2d0] sm:$0xff] %v612
        %741 = vst [vmem:[%s135 + $0x2d8] sm:$0xff] %v613
        %742 = vst [vmem:[%s135 + $0x2e0] sm:$0xff] %v614
        %743 = vst [vmem:[%s135 + $0x2e8] sm:$0xff] %v615
        %744 = vst [vmem:[%s135 + $0x2f0] sm:$0xff] %v616
        %745 = vst [vmem:[%s135 + $0x2f8] sm:$0xff] %v617
        %746 = vst [vmem:[%s135 + $0x300] sm:$0xff] %v618
        %747 = vst [vmem:[%s135 + $0x308] sm:$0xff] %v619
        %748 = vst [vmem:[%s135 + $0x310] sm:$0xff] %v620
        %749 = vst [vmem:[%s135 + $0x318] sm:$0xff] %v621
        %750 = vst [vmem:[%s135 + $0x320] sm:$0xff] %v622
        %751 = vst [vmem:[%s135 + $0x328] sm:$0xff] %v623
        %752 = vst [vmem:[%s135 + $0x330] sm:$0xff] %v624
        %753 = vst [vmem:[%s135 + $0x338] sm:$0xff] %v625
        %754 = vst [vmem:[%s135 + $0x340] sm:$0xff] %v626
        %755 = vst [vmem:[%s135 + $0x348] sm:$0xff] %v627
        %756 = vst [vmem:[%s135 + $0x350] sm:$0xff] %v628
        %757 = vst [vmem:[%s135 + $0x358] sm:$0xff] %v629
        %758 = vst [vmem:[%s135 + $0x360] sm:$0xff] %v630
        %759 = vst [vmem:[%s135 + $0x368] sm:$0xff] %v631
        %760 = vst [vmem:[%s135 + $0x370] sm:$0xff] %v632
        %761 = vst [vmem:[%s135 + $0x378] sm:$0xff] %v633
        %762 = vst [vmem:[%s135 + $0x380] sm:$0xff] %v634
        %763 = vst [vmem:[%s135 + $0x388] sm:$0xff] %v635
        %764 = vst [vmem:[%s135 + $0x390] sm:$0xff] %v636
        %765 = vst [vmem:[%s135 + $0x398] sm:$0xff] %v637
        %766 = vst [vmem:[%s135 + $0x3a0] sm:$0xff] %v638
        %767 = vst [vmem:[%s135 + $0x3a8] sm:$0xff] %v639
        %768 = vst [vmem:[%s135 + $0x3b0] sm:$0xff] %v640
        %769 = vst [vmem:[%s135 + $0x3b8] sm:$0xff] %v641
        %770 = vst [vmem:[%s135 + $0x3c0] sm:$0xff] %v642
        %771 = vst [vmem:[%s135 + $0x3c8] sm:$0xff] %v643
        %772 = vst [vmem:[%s135 + $0x3d0] sm:$0xff] %v644
        %773 = vst [vmem:[%s135 + $0x3d8] sm:$0xff] %v645
        %774 = vst [vmem:[%s135 + $0x3e0] sm:$0xff] %v646
        %775 = vst [vmem:[%s135 + $0x3e8] sm:$0xff] %v647
        %776 = vst [vmem:[%s135 + $0x3f0] sm:$0xff] %v648
        %777 = vst [vmem:[%s135 + $0x3f8] sm:$0xff] %v649
        %s778 = sand.u32 %s52, 1
        %s779 = scalar_lea.sflag [#allocation4], %s778
        %s780 = sand.u32 %s52, 1
        %s781 = smul.addr %s780, 1024
        %s782 = scalar_lea.vmem [#allocation5], %s781
        // Predicated region
        $region29: #{tpu_custom_call.1} parent=23 // pred_check
          %p783 = pneg %p62
        $region30: #{tpu_custom_call.1} parent=23 // pred_check_branch
          %785 = sbr.rel (%p783) target = $region32
        $region31: #{tpu_custom_call.1} parent=23 // pred_region
          %s786 = smul.u32 8, %s18
          %s788 = ssub.s32 16384, 16384
          %789 = vsyncadd %s779, %s788
          %s790 = smul.addr %s786, 16
          %s791 = smul.addr %s790, 128
          %s792 = scalar_lea.hbm %s1, %s791
          %s793 = sshll.u32 %s782, 4
          %s794 = int_to_ptr.vmem [resolvable:$true] %s793
          %799 = dma.vmem_to_hbm [thread:$0]  %s794, 16384, %s792, %s779, 2048, 2048, 128
        $region32: #{tpu_custom_call.1} parent=23 // pred_fallthru
          _
      $region24: #{tpu_custom_call.1} parent=5 // pred_fallthru
        _
      %p800 = scmp.le.s32.totalorder 2, %s13
      // Predicated region
      $region33: #{tpu_custom_call.1} parent=5 // pred_check
        %p801 = pneg %p800
      $region34: #{tpu_custom_call.1} parent=5 // pred_check_branch
        %803 = sbr.rel (%p801) target = $region36
      $region35: #{tpu_custom_call.1} parent=5 // pred_region
        %s804 = ssub.s32 %s13, 2
        // Predicated region
        $region37: #{tpu_custom_call.1} parent=35 // pred_check
          %p805 = pneg %p68
        $region38: #{tpu_custom_call.1} parent=35 // pred_check_branch
          %807 = sbr.rel (%p805) target = $region40
        $region39: #{tpu_custom_call.1} parent=35 // pred_region
          %s808 = sand.u32 %s53, 1
          %s809 = scalar_lea.sflag [#allocation4], %s808
          %s810 = sand.u32 %s53, 1
          %s811 = smul.addr %s810, 1024
          %s812 = scalar_lea.vmem [#allocation5], %s811
          %813 = dma.done %s809, 16384
        $region40: #{tpu_custom_call.1} parent=35 // pred_fallthru
          _
      $region36: #{tpu_custom_call.1} parent=5 // pred_fallthru
        _
    $region6: #{tpu_custom_call.1} parent=1 // loop_footer
      %s17 = sadd.s32 1, %s13
    $region7: #{tpu_custom_call.1} parent=1 // loop_footer_branch
      %12 = sbr.rel target = $region3
    $region8: #{tpu_custom_call.1} parent=1 // loop_exit
      _
    %814 = vsyncpa [#allocation3], 1
    %s815 = scalar_lea.sflag [#allocation3], 1
    %816 = vsyncpa %s815, 1
    %817 = vsyncpa [#allocation4], 1
    %s818 = scalar_lea.sflag [#allocation4], 1
    %819 = vsyncpa %s818, 1

</llo_original>
